<compile_context>
chip_gen: v5e
topology: v5e:2x2
jax: 0.10.0
libtpu: 0.0.40
codegen_flags: <defaults>
</compile_context>

<pallas_src>
import functools

import jax
import jax.numpy as jnp
from jax import lax
from jax.experimental import pallas as pl
from jax.experimental.pallas import tpu as pltpu

_MiB = 1024 * 1024


def _max_margin_kernel(x_ref, mdc_ref, mdr_ref, out_ref, *,
                       tile_rows, num_tiles, rows_in_last):
    """One row tile: partial sum of relu(md_i + x_ij) + relu(md_j + x_ij)."""
    t = pl.program_id(0)

    x = x_ref[...].astype(jnp.float32)     # (tile_rows, n)
    mdc = mdc_ref[...]                     # (tile_rows, 1): margin - x[i,i] (this tile's rows)
    mdr = mdr_ref[...]                     # (1, n):         margin - x[j,j] (all columns)

    # first half : relu(margin - x[i,i] + x[i,j])
    # second half: relu(margin - x[j,j] + x[i,j])  (same multiset as PyTorch's x3 branch)
    vals = jnp.maximum(mdc + x, 0.0) + jnp.maximum(mdr + x, 0.0)

    def _emit(total):
        # Per-step partial sum, splatted into this step's (1,8,128) output block.
        out_ref[...] = jnp.broadcast_to(total.astype(jnp.float32), out_ref.shape)

    if rows_in_last == tile_rows:
        # Every tile is full: no masking anywhere.
        _emit(jnp.sum(vals))
    else:
        last = num_tiles - 1

        @pl.when(t != last)
        def _():                            # clean tiles pay zero mask cost
            _emit(jnp.sum(vals))

        @pl.when(t == last)
        def _():                            # ragged tile only: mask AFTER the column reduce
            row_sums = jnp.sum(vals, axis=1, keepdims=True)        # (tile_rows, 1)
            rid = lax.broadcasted_iota(jnp.int32, (tile_rows, 1), 0)
            _emit(jnp.sum(jnp.where(rid < rows_in_last, row_sums, 0.0)))


def _vmem_plan():
    """Per-generation (x_tile_budget_bytes, vmem_limit_bytes)."""
    vmem_cap = None
    try:
        vmem_cap = int(getattr(pltpu.get_tpu_info(), "vmem_capacity_bytes", 0)) or None
    except Exception:
        vmem_cap = None
    kind = ""
    try:
        kind = jax.devices()[0].device_kind.lower()
    except Exception:
        pass

    if vmem_cap is not None and vmem_cap <= 32 * _MiB:
        return 8 * _MiB, 14 * _MiB            # very small-VMEM parts: stay conservative
    if (vmem_cap is not None and vmem_cap <= 64 * _MiB) or "v7" in kind:
        return 14 * _MiB, 30 * _MiB           # v7x: 64 MiB per TC, 2 TCs -> modest per-core set
    if "v5" in kind or "v3" in kind or "v2" in kind:
        return 13 * _MiB, 28 * _MiB           # v5e-class: bandwidth-starved, bigger-than-default tiles
    return 28 * _MiB, 48 * _MiB               # v6e / other 128 MiB-VMEM parts


def _pick_tile_rows(n, itemsize, sublane, budget_bytes):
    """Rows per tile so the double-buffered (tile_rows, n) x block fits the budget."""
    if 2 * n * n * itemsize <= budget_bytes:
        return n                               # whole matrix in one grid step
    max_tr = budget_bytes // (2 * n * itemsize)
    max_tr = (max_tr // sublane) * sublane
    max_tr = min(max_tr, 2048)
    return int(max(sublane, max_tr))


def max_margin_ranking_loss(x, *, margin=1.0, fix_norm=True, tile_rows=None):
    n = x.shape[0]
    assert x.ndim == 2 and x.shape == (n, n), "expected a square similarity matrix"

    itemsize = jnp.dtype(x.dtype).itemsize
    sublane = max(8, 32 // max(itemsize, 1))          # 8 f32, 16 bf16, 32 int8/fp8
    budget, vmem_limit = _vmem_plan()

    if tile_rows is None:
        tile_rows = _pick_tile_rows(n, itemsize, sublane, budget)
    tile_rows = min(int(tile_rows), n)
    if tile_rows < n:                                  # (sublane,128) layout constraint
        tile_rows = max(sublane, (tile_rows // sublane) * sublane)
        if tile_rows >= n:
            tile_rows = n

    num_tiles = (n + tile_rows - 1) // tile_rows
    rows_in_last = n - (num_tiles - 1) * tile_rows

    # Diagonal folded with the margin, passed in BOTH layouts so the kernel
    # never transposes and the hot loop has no extra subtracts/splats.
    md = jnp.float32(margin) - jnp.diagonal(x).astype(jnp.float32)
    md_col = md.reshape(n, 1)
    md_row = md.reshape(1, n)

    kernel = functools.partial(
        _max_margin_kernel,
        tile_rows=tile_rows, num_tiles=num_tiles, rows_in_last=rows_in_last)

    partials = pl.pallas_call(
        kernel,
        out_shape=jax.ShapeDtypeStruct((num_tiles, 8, 128), jnp.float32),
        grid_spec=pltpu.PrefetchScalarGridSpec(
            num_scalar_prefetch=0,
            grid=(num_tiles,),
            in_specs=[
                pl.BlockSpec((tile_rows, n), lambda i: (i, 0)),   # x row tile (native dtype DMA)
                pl.BlockSpec((tile_rows, 1), lambda i: (i, 0)),   # margin - diag, row-tiled column
                pl.BlockSpec((1, n), lambda i: (0, 0)),           # margin - diag, resident row
            ],
            out_specs=pl.BlockSpec((1, 8, 128), lambda i: (i, 0, 0)),
        ),
        compiler_params=pltpu.CompilerParams(
            dimension_semantics=("parallel",),                    # megacore-shardable on v7x
            vmem_limit_bytes=int(vmem_limit)),
    )(x, md_col, md_row)

    total = jnp.sum(partials[:, 0, 0])
    if fix_norm:
        # diagonal of each half is exactly relu(margin): subtract analytically
        total = total - jnp.float32(2.0 * n * max(float(margin), 0.0))
        return total * jnp.float32(1.0 / (2.0 * n * (n - 1)))
    return total * jnp.float32(1.0 / (2.0 * n * n))


def _reference(x, margin=1.0, fix_norm=True):
    """Plain-JAX mirror of the PyTorch MaxMarginRankingLoss.forward."""
    x = x.astype(jnp.float32)
    n = x.shape[0]
    d = jnp.diagonal(x)
    t1 = jnp.maximum(margin - d[:, None] + x, 0.0)   # relu(margin - x[i,i] + x[i,j])
    t2 = jnp.maximum(margin - d[None, :] + x, 0.0)   # relu(margin - x[j,j] + x[i,j])
    if fix_norm:
        off = 1.0 - jnp.eye(n, dtype=jnp.float32)
        return jnp.sum((t1 + t2) * off) / (2.0 * n * (n - 1))
    return jnp.sum(t1 + t2) / (2.0 * n * n)


if __name__ == "__main__":
    k1, k2, k3, k4 = jax.random.split(jax.random.PRNGKey(0), 4)

    # Test 1: small similarity matrix -> single grid step, whole matrix in VMEM.
    n = 8
    x = jax.random.normal(k1, (n, n), jnp.float32)
    out = jax.block_until_ready(max_margin_ranking_loss(x))
    ref = _reference(x)
    assert jnp.allclose(out, ref, rtol=1e-5, atol=1e-5), (out, ref)

    # Test 2: multi-step "parallel" grid over row tiles (evenly divisible).
    n = 32
    x2 = jax.random.normal(k2, (n, n), jnp.float32)
    out2 = jax.block_until_ready(max_margin_ranking_loss(x2, tile_rows=8))
    ref2 = _reference(x2)
    assert jnp.allclose(out2, ref2, rtol=1e-5, atol=1e-5), (out2, ref2)

    # Test 3: ragged last tile, plus the fix_norm=False path.
    n = 20
    x3 = jax.random.normal(k3, (n, n), jnp.float32)
    out3 = jax.block_until_ready(max_margin_ranking_loss(x3, tile_rows=8))
    ref3 = _reference(x3)
    assert jnp.allclose(out3, ref3, rtol=1e-5, atol=1e-5), (out3, ref3)

    out4 = jax.block_until_ready(
        max_margin_ranking_loss(x3, fix_norm=False, tile_rows=8))
    ref4 = _reference(x3, fix_norm=False)
    assert jnp.allclose(out4, ref4, rtol=1e-5, atol=1e-5), (out4, ref4)

    # Test 4: native bf16 input (dtype-aware 16-row sublane tiles, in-kernel upcast).
    n = 48
    x5 = jax.random.normal(k4, (n, n), jnp.float32).astype(jnp.bfloat16)
    out5 = jax.block_until_ready(max_margin_ranking_loss(x5, tile_rows=16))
    ref5 = _reference(x5)
    assert jnp.allclose(out5, ref5, rtol=1e-5, atol=1e-3), (out5, ref5)

    print("KERNEL_OK")
</pallas_src>

<mosaic_0001>
module attributes {stable_mosaic.version = 11 : i64} {
  func.func @_max_margin_kernel(%arg0: i32, %arg1: memref<8x8xf32, #tpu.memory_space<vmem>>, %arg2: memref<8x1xf32, #tpu.memory_space<vmem>>, %arg3: memref<1x8xf32, #tpu.memory_space<vmem>>, %arg4: memref<1x8x128xf32, #tpu.memory_space<vmem>>) attributes {dimension_semantics = [#tpu.dimension_semantics<parallel>], iteration_bounds = array<i64: 1>, scalar_prefetch = 0 : i64, scratch_operands = 0 : i64, tpu.core_type = #tpu.core_type<tc>, window_params = [{transform_indices = @transform_0, window_bounds = array<i64: 8, 8>}, {transform_indices = @transform_1, window_bounds = array<i64: 8, 1>}, {pipeline_mode = #tpu.pipeline_mode<synchronous>, transform_indices = @transform_2, window_bounds = array<i64: 1, 8>}, {transform_indices = @transform_3, window_bounds = array<i64: 1, 8, 128>}]} {
    %c0 = arith.constant 0 : index
    %c0_0 = arith.constant 0 : index
    %0 = vector.load %arg1[%c0, %c0_0] : memref<8x8xf32, #tpu.memory_space<vmem>>, vector<8x8xf32>
    %c0_1 = arith.constant 0 : index
    %c0_2 = arith.constant 0 : index
    %1 = vector.load %arg2[%c0_1, %c0_2] : memref<8x1xf32, #tpu.memory_space<vmem>>, vector<8x1xf32>
    %c0_3 = arith.constant 0 : index
    %c0_4 = arith.constant 0 : index
    %2 = vector.load %arg3[%c0_3, %c0_4] : memref<1x8xf32, #tpu.memory_space<vmem>>, vector<1x8xf32>
    %3 = vector.broadcast %1 : vector<8x1xf32> to vector<8x8xf32>
    %4 = arith.addf %3, %0 : vector<8x8xf32>
    %cst = arith.constant 0.000000e+00 : f32
    %5 = vector.broadcast %cst : f32 to vector<8x8xf32>
    %6 = arith.maximumf %4, %5 : vector<8x8xf32>
    %7 = vector.broadcast %2 : vector<1x8xf32> to vector<8x8xf32>
    %8 = arith.addf %7, %0 : vector<8x8xf32>
    %cst_5 = arith.constant 0.000000e+00 : f32
    %9 = vector.broadcast %cst_5 : f32 to vector<8x8xf32>
    %10 = arith.maximumf %8, %9 : vector<8x8xf32>
    %11 = arith.addf %6, %10 : vector<8x8xf32>
    %12 = vector.shape_cast %11 : vector<8x8xf32> to vector<1x8x8xf32>
    %cst_6 = arith.constant dense<0.000000e+00> : vector<1xf32>
    %13 = vector.multi_reduction <add>, %12, %cst_6 [1, 2] : vector<1x8x8xf32> to vector<1xf32>
    %14 = vector.shape_cast %13 : vector<1xf32> to vector<1x1x1xf32>
    %15 = vector.extract %14[0, 0, 0] : f32 from vector<1x1x1xf32>
    %16 = vector.broadcast %15 : f32 to vector<1x8x128xf32>
    %c0_7 = arith.constant 0 : index
    %c0_8 = arith.constant 0 : index
    %c0_9 = arith.constant 0 : index
    %17 = vector.load %arg4[%c0_7, %c0_8, %c0_9] : memref<1x8x128xf32, #tpu.memory_space<vmem>>, vector<1x8x128xf32>
    tpu.vector_store %arg4[%c0_7, %c0_8, %c0_9], %16 {strides = array<i32>} : memref<1x8x128xf32, #tpu.memory_space<vmem>>, vector<1x8x128xf32>,
    return
  }
  func.func @transform_0(%arg0: i32) -> (i32, i32) {
    %c0_i32 = arith.constant 0 : i32
    %c0_i32_0 = arith.constant 0 : i32
    return %arg0, %c0_i32 : i32, i32
  }
  func.func @transform_1(%arg0: i32) -> (i32, i32) {
    %c0_i32 = arith.constant 0 : i32
    %c0_i32_0 = arith.constant 0 : i32
    return %arg0, %c0_i32 : i32, i32
  }
  func.func @transform_2(%arg0: i32) -> (i32, i32) {
    %c0_i32 = arith.constant 0 : i32
    %c0_i32_0 = arith.constant 0 : i32
    %c0_i32_1 = arith.constant 0 : i32
    return %c0_i32, %c0_i32_0 : i32, i32
  }
  func.func @transform_3(%arg0: i32) -> (i32, i32, i32) {
    %c0_i32 = arith.constant 0 : i32
    %c0_i32_0 = arith.constant 0 : i32
    %c0_i32_1 = arith.constant 0 : i32
    return %arg0, %c0_i32, %c0_i32_0 : i32, i32, i32
  }
}

</mosaic_0001>

<llo_original>
// kernel: tpu_custom_call.1
$region0: #{tpu_custom_call.1}
  #allocation0 [shape = 'u32[]', space=smem, size = 0x4, offset = 0x4, fixed_abs, tag = 'smem constant byte address 0x4 - core index']
  #allocation1 [shape = 'u32[72,128]{1,0:T(1,128)}', space=vmem, size = 0x9000, scoped, tag = 'internal scratch']
  %s0 = inlined_call_operand.vmem [shape: f32[8,8], index: 0, kind: input, shape index: {}]
  %s1 = inlined_call_operand.vmem [shape: f32[8,1], index: 1, kind: input, shape index: {}]
  %s2 = inlined_call_operand.vmem [shape: f32[1,8], index: 2, kind: input, shape index: {}]
  %s3 = inlined_call_operand.hbm [shape: f32[1,8,128], index: 3, kind: output, shape index: {}]
  %s4 = sld [smem:[#allocation0]]
  $region22: #{tpu_custom_call.1} parent=0
    _
  %s6 = ssub.s32 1, %s4
  %s7 = scalar_select 0, %s6, %s4
  $region1: #{tpu_custom_call.1} parent=0
    #allocation2 [shape = 'u8[4096]{0}', space=vmem, size = 0x1000, scoped, tag = 'output window, operand 0, single buffered']
    #allocation3 [shape = 's32[1]{0}', space=sflag, size = 0x4, scoped, tag = 'scoped memory for tpu_custom_call.1']
    %8 = vsyncpa [#allocation3], 0
    // Predicated region
    $region2: #{tpu_custom_call.1} parent=1 // pred_check
      _
    $region3: #{tpu_custom_call.1} parent=1 // pred_check_branch
      %10 = sbr.rel (0) target = $region5
    $region4: #{tpu_custom_call.1} parent=1 // pred_region
      _
    $region5: #{tpu_custom_call.1} parent=1 // pred_fallthru
      _
    // Predicated region
    $region6: #{tpu_custom_call.1} parent=1 // pred_check
      _
    $region7: #{tpu_custom_call.1} parent=1 // pred_check_branch
      %12 = sbr.rel (0) target = $region9
    $region8: #{tpu_custom_call.1} parent=1 // pred_region
      _
    $region9: #{tpu_custom_call.1} parent=1 // pred_fallthru
      _
    // Predicated region
    $region10: #{tpu_custom_call.1} parent=1 // pred_check
      _
    $region11: #{tpu_custom_call.1} parent=1 // pred_check_branch
      %14 = sbr.rel (0) target = $region13
    $region12: #{tpu_custom_call.1} parent=1 // pred_region
      _
    $region13: #{tpu_custom_call.1} parent=1 // pred_fallthru
      _
    %v15 = vld [vmem:[%s0] sm:$0xff]
    %v16 = vld [vmem:[%s1] sm:$0xff]
    %v17 = vld [vmem:[%s2] sm:$0x1]
    %19 = vset.pattern.permute.xlu0 0
    %20 = vperm.xlu0 %19, %v16
    %v21 = vpop.permute.xlu0 %20
    %v23 = vadd.f32 %v21, %v15
    %v24 = vmax.f32 %v23, 0.0
    %v26 = vperm.slane %v17, 0
    %v28 = vadd.f32 %v26, %v15
    %v29 = vmax.f32 %v28, 0.0
    %v30 = vadd.f32 %v24, %v29
    %vm31 = vcmask 64512
    %v32 = vsel %vm31, %v30, 0.0
    %33 = vadd.xlane.f32.xlu0 %v32
    %v34 = vpop.xlane.xlu0 %33
    %v35 = vrot.slane %v34, 4
    %v36 = vadd.f32 %v34, %v35
    %v37 = vrot.slane %v36, 2
    %v38 = vadd.f32 %v36, %v37
    %v39 = vrot.slane %v38, 1
    %v40 = vadd.f32 %v38, %v39
    %s41 = vtos %v40
    %v42 = vstv %s41
    %43 = vst [vmem:[#allocation2] sm:$0xff] %v42
    // Predicated region
    $region14: #{tpu_custom_call.1} parent=1 // pred_check
      _
    $region15: #{tpu_custom_call.1} parent=1 // pred_check_branch
      %45 = sbr.rel (0) target = $region17
    $region16: #{tpu_custom_call.1} parent=1 // pred_region
      %47 = vsyncadd [#allocation3], 0
      %s49 = sshll.u32 [#allocation2], 4
      %s50 = int_to_ptr.vmem [resolvable:$true] %s49
      %s51 = sshll.u32 %s3, 4
      %s52 = int_to_ptr.hbm [resolvable:$true] %s51
      %54 = dma.vmem_to_hbm [thread:$0]  %s50, 128, %s52, [#allocation3]
    $region17: #{tpu_custom_call.1} parent=1 // pred_fallthru
      _
    // Predicated region
    $region18: #{tpu_custom_call.1} parent=1 // pred_check
      _
    $region19: #{tpu_custom_call.1} parent=1 // pred_check_branch
      %56 = sbr.rel (0) target = $region21
    $region20: #{tpu_custom_call.1} parent=1 // pred_region
      %58 = dma.done [#allocation3], 128
    $region21: #{tpu_custom_call.1} parent=1 // pred_fallthru
      _
    %59 = vsyncpa [#allocation3], 1

</llo_original>
